<compile_context>
chip_gen: v6e
topology: v6e:2x2x1
jax: 0.10.0
libtpu: 0.0.40
codegen_flags: <defaults>
</compile_context>

<pallas_src>
import math
from functools import partial

import jax
import jax.numpy as jnp
import numpy as np
from jax import lax
from jax.experimental import pallas as pl
from jax.experimental.pallas import tpu as pltpu

NORM = 1.0 / math.sqrt(2.0)


def _prelu(x, a):
    # torch.nn.PReLU with num_parameters=1: max(0,x) + a*min(0,x)
    return jnp.where(x >= 0, x, a * x)


def convblock_kernel(h_ref, res_ref, ic_ref, gb_ref, w_ref, alpha_ref,
                     v_ref, cond_ref, *, mxu_dtype):
    Bt, C, L = h_ref.shape
    N = Bt * L

    # 'same'-padding boundary masks on the batch-folded (C, Bt*L) slab, hoisted: built
    # once per grid step and shared by every tap of every conv. pos = position within
    # the batch segment, so rolls never leak data across batch boundaries.
    pos = lax.broadcasted_iota(jnp.int32, (C, N), 1) % L
    masks = {d: (pos < L - d) if d > 0 else (pos >= -d) for d in (-2, -1, 1, 2)}

    def fold(x_ref):
        # (Bt, C, L) VMEM block -> (C, Bt*L) lane-folded slab (free when Bt == 1).
        if Bt == 1:
            return x_ref[0]
        return jnp.concatenate([x_ref[b] for b in range(Bt)], axis=1)

    def shift(x, d):
        # out[:, b*L + p] = x[:, b*L + p + d] if 0 <= p + d < L else 0  (d static)
        if d == 0:
            return x.astype(mxu_dtype)
        rolled = pltpu.roll(x, shift=(-d) % N, axis=1)        # f32 XLU roll
        return jnp.where(masks[d], rolled.astype(mxu_dtype), jnp.zeros((), mxu_dtype))

    ones_row = jnp.ones((1, N), mxu_dtype)                     # bias row (shared)

    def conv_same(x, w, K):
        # im2col -> single (C, K*C+1) x (K*C+1, Bt*L) MXU matmul, bias matmul-folded.
        # PyTorch cross-correlation: out[co,l] = sum_{ci,k} w[co,ci,k] x[ci, l+k-pad] + b[co]
        pad = (K - 1) // 2
        xs = jnp.concatenate([shift(x, k - pad) for k in range(K)] + [ones_row], axis=0)
        return jnp.dot(w, xs, preferred_element_type=jnp.float32)

    a1, a2, a3 = alpha_ref[0], alpha_ref[1], alpha_ref[2]
    w1 = w_ref[0]                          # (C, 5*C+1)  [weight taps | bias]
    w2 = w_ref[1][:, : 3 * C + 1]          # (C, 3*C+1)
    w3 = w_ref[2][:, : 3 * C + 1]

    def film_coeffs():
        # per-batch (C,1) gamma/beta columns, broadcast across their L-long lane segment
        g = [gb_ref[b] for b in range(Bt)]                     # each (2C, 1) f32
        if Bt == 1:
            return g[0][:C], g[0][C:]
        gam = jnp.concatenate([jnp.broadcast_to(x[:C], (C, L)) for x in g], axis=1)
        bet = jnp.concatenate([jnp.broadcast_to(x[C:], (C, L)) for x in g], axis=1)
        return gam, bet

    # residual merge (rate_change_dir='none', res is not None)
    h = (fold(h_ref) + fold(res_ref)) * NORM                   # (C, N) f32

    # conv1: PReLU -> Conv1d(C, C, 5, padding='same')
    cond = conv_same(_prelu(h, a1), w1, 5)

    # additive input conditioning (signal_cond_proj is None) + FiLM(noise_cond)
    c = (cond + fold(ic_ref)) * NORM
    gam, bet = film_coeffs()
    c = gam * c + bet

    # conv2 / conv3: PReLU -> Conv1d(C, C, 3, padding='same')
    c = conv_same(_prelu(c, a2), w2, 3)
    c = conv_same(_prelu(c, a3), w3, 3)

    v = (h + c) * NORM

    # unfold: write each batch segment back (static, lane-aligned slices when L % 128 == 0)
    for b in range(Bt):
        v_ref[b] = v[:, b * L:(b + 1) * L]
        cond_ref[b] = cond[:, b * L:(b + 1) * L]


@partial(jax.jit, static_argnames=("mxu_dtype", "batch_tile"))
def conv_block_apply(h, res, input_cond, noise_cond, params, *,
                     mxu_dtype=jnp.bfloat16, batch_tile=8):
    """Returns (h_out, res_out, cond_out) like ConvBlock.forward (rate_change_dir='none')."""
    B, C, L = h.shape

    # glue: pad/trim input_cond along time to match conv1's output length (as in forward)
    Li = input_cond.shape[-1]
    if Li < L:
        input_cond = jnp.pad(input_cond, ((0, 0), (0, 0), (0, L - Li)))
    elif Li > L:
        input_cond = input_cond[..., :L]

    # glue: FiLM parameters packed into a single (B, 2C, 1) stream (gamma rows 0..C-1,
    # beta rows C..2C-1) to cut one DMA stream per step.
    gb = noise_cond.reshape(B, 2 * C, 1).astype(jnp.float32)

    # glue: all weights + biases packed into one constant (3, C, 5C+1) im2col array in the
    # MXU dtype; bias is the last contraction column (matmul-folded against a ones row).
    wmax = 5 * C + 1

    def pack(w, b):
        cout, cin, k = w.shape
        wf = jnp.concatenate([jnp.transpose(w, (0, 2, 1)).reshape(cout, k * cin),
                              b.reshape(cout, 1)], axis=1)
        return jnp.pad(wf, ((0, 0), (0, wmax - wf.shape[1])))

    w_all = jnp.stack([pack(params["w1"], params["b1"]),
                       pack(params["w2"], params["b2"]),
                       pack(params["w3"], params["b3"])]).astype(mxu_dtype)
    alphas = jnp.stack([params["a1"], params["a2"], params["a3"]]).astype(jnp.float32)

    # Batch tile: cap at B//2 so the grid has >=2 steps and ("parallel",) can shard across
    # the two v7x TensorCores (v5e/v6e have 1 TC, where this only costs one extra tiny
    # step); keep it an exact divisor of B.
    bt = max(1, min(batch_tile, B // 2)) if B > 1 else 1
    while B % bt:
        bt -= 1

    act_spec = pl.BlockSpec((bt, C, L), lambda i: (i, 0, 0))

    v_out, cond_out = pl.pallas_call(
        partial(convblock_kernel, mxu_dtype=mxu_dtype),
        out_shape=(jax.ShapeDtypeStruct((B, C, L), jnp.float32),
                   jax.ShapeDtypeStruct((B, C, L), jnp.float32)),
        grid_spec=pltpu.PrefetchScalarGridSpec(
            num_scalar_prefetch=0,
            grid=(B // bt,),
            in_specs=[act_spec, act_spec, act_spec,
                      pl.BlockSpec((bt, 2 * C, 1), lambda i: (i, 0, 0)),     # gamma/beta
                      pl.BlockSpec((3, C, wmax), lambda i: (0, 0, 0)),       # weights+bias
                      pl.BlockSpec(memory_space=pltpu.MemorySpace.SMEM)],    # PReLU alphas
            out_specs=[act_spec, act_spec],
        ),
        compiler_params=pltpu.CompilerParams(
            dimension_semantics=("parallel",),
            # Working set is tiny at these shapes; derive per-generation (get_tpu_info)
            # once the long-L time-tiling TODO is implemented.
            vmem_limit_bytes=32 * 1024 * 1024,
        ),
    )(h, res, input_cond, gb, w_all, alphas)

    # ConvBlock (rate_change_dir != 'down') returns (v_out, v_out, cond_out)
    return v_out, v_out, cond_out


# ---------------- pure-JAX reference (for correctness check) ----------------
def _conv1d_same_ref(x, w, b):
    K = w.shape[-1]
    pad = (K - 1) // 2
    y = lax.conv_general_dilated(x, w, (1,), [(pad, pad)],
                                 dimension_numbers=("NCH", "OIH", "NCH"))
    return y + b[None, :, None]


def conv_block_ref(h, res, input_cond, noise_cond, params):
    B, C, L = h.shape
    h = (h + res) * NORM
    cond_out = _conv1d_same_ref(_prelu(h, params["a1"]), params["w1"], params["b1"])
    c = (cond_out + input_cond) * NORM
    gamma = noise_cond[:, :C, None]
    beta = noise_cond[:, C:, None]
    c = gamma * c + beta
    c = _conv1d_same_ref(_prelu(c, params["a2"]), params["w2"], params["b2"])
    c = _conv1d_same_ref(_prelu(c, params["a3"]), params["w3"], params["b3"])
    v = (h + c) * NORM
    return v, v, cond_out


if __name__ == "__main__":
    B, C, L = 2, 8, 256  # n_channels=8, seq length 256
    key = jax.random.PRNGKey(0)
    ks = jax.random.split(key, 10)

    h = jax.random.normal(ks[0], (B, C, L), jnp.float32)
    res = jax.random.normal(ks[1], (B, C, L), jnp.float32)
    input_cond = jax.random.normal(ks[2], (B, C, L), jnp.float32)
    noise_cond = jax.random.normal(ks[3], (B, 2 * C), jnp.float32)

    # Deterministic synthetic parameters (Conv1d weight/bias shapes from __init__;
    # PReLU default num_parameters=1, init=0.25).
    params = {
        "w1": 0.1 * jax.random.normal(ks[4], (C, C, 5), jnp.float32),
        "b1": 0.1 * jax.random.normal(ks[5], (C,), jnp.float32),
        "w2": 0.1 * jax.random.normal(ks[6], (C, C, 3), jnp.float32),
        "b2": 0.1 * jax.random.normal(ks[7], (C,), jnp.float32),
        "w3": 0.1 * jax.random.normal(ks[8], (C, C, 3), jnp.float32),
        "b3": 0.1 * jax.random.normal(ks[9], (C,), jnp.float32),
        "a1": jnp.float32(0.25),
        "a2": jnp.float32(0.25),
        "a3": jnp.float32(0.25),
    }

    v_ref, _, cond_ref = conv_block_ref(h, res, input_cond, noise_cond, params)

    # Exact-math path (f32 MXU operands): validates kernel indexing/semantics tightly.
    v32, _, c32 = conv_block_apply(h, res, input_cond, noise_cond, params,
                                   mxu_dtype=jnp.float32)
    jax.block_until_ready((v32, c32))
    np.testing.assert_allclose(np.asarray(c32), np.asarray(cond_ref), atol=1e-3, rtol=1e-3)
    np.testing.assert_allclose(np.asarray(v32), np.asarray(v_ref), atol=1e-3, rtol=1e-3)

    # Production path (bf16 MXU operands incl. matmul-folded bias, f32 accumulate /
    # elementwise): tolerance is looser only because of bf16 operand quantization across
    # three stacked convs.
    v16, _, c16 = conv_block_apply(h, res, input_cond, noise_cond, params)
    jax.block_until_ready((v16, c16))
    np.testing.assert_allclose(np.asarray(c16), np.asarray(cond_ref), atol=2e-2, rtol=2e-2)
    np.testing.assert_allclose(np.asarray(v16), np.asarray(v_ref), atol=2e-2, rtol=2e-2)

    print("KERNEL_OK")
</pallas_src>

<mosaic_0001>
module attributes {stable_mosaic.version = 11 : i64} {
  func.func @convblock_kernel(%arg0: i32, %arg1: memref<1x8x256xf32, #tpu.memory_space<vmem>>, %arg2: memref<1x8x256xf32, #tpu.memory_space<vmem>>, %arg3: memref<1x8x256xf32, #tpu.memory_space<vmem>>, %arg4: memref<1x16x1xf32, #tpu.memory_space<vmem>>, %arg5: memref<3x8x41xf32, #tpu.memory_space<vmem>>, %arg6: memref<3xf32, #tpu.memory_space<smem>>, %arg7: memref<1x8x256xf32, #tpu.memory_space<vmem>>, %arg8: memref<1x8x256xf32, #tpu.memory_space<vmem>>) attributes {dimension_semantics = [#tpu.dimension_semantics<parallel>], iteration_bounds = array<i64: 2>, scalar_prefetch = 0 : i64, scratch_operands = 0 : i64, tpu.core_type = #tpu.core_type<tc>, window_params = [{transform_indices = @transform_0, window_bounds = array<i64: 1, 8, 256>}, {transform_indices = @transform_1, window_bounds = array<i64: 1, 8, 256>}, {transform_indices = @transform_2, window_bounds = array<i64: 1, 8, 256>}, {transform_indices = @transform_3, window_bounds = array<i64: 1, 16, 1>}, {pipeline_mode = #tpu.pipeline_mode<synchronous>, transform_indices = @transform_4, window_bounds = array<i64: 3, 8, 41>}, {transform_indices = @transform_5, window_bounds = array<i64: 3>}, {transform_indices = @transform_6, window_bounds = array<i64: 1, 8, 256>}, {transform_indices = @transform_7, window_bounds = array<i64: 1, 8, 256>}]} {
    %0 = tpu.iota {dimensions = array<i32: 1>} : vector<8x256xi32>
    %c256_i32 = arith.constant 256 : i32
    %c0_i32 = arith.constant 0 : i32
    %1 = arith.cmpi eq, %c256_i32, %c0_i32 : i32
    %c1_i32 = arith.constant 1 : i32
    %2 = arith.select %1, %c1_i32, %c256_i32 : i32
    %3 = vector.broadcast %2 : i32 to vector<8x256xi32>
    %4 = arith.remsi %0, %3 : vector<8x256xi32>
    %c0_i32_0 = arith.constant 0 : i32
    %5 = vector.broadcast %c0_i32_0 : i32 to vector<8x256xi32>
    %6 = arith.cmpi ne, %4, %5 : vector<8x256xi32>
    %c0_i32_1 = arith.constant 0 : i32
    %7 = vector.broadcast %c0_i32_1 : i32 to vector<8x256xi32>
    %8 = arith.cmpi slt, %4, %7 : vector<8x256xi32>
    %c0_i32_2 = arith.constant 0 : i32
    %9 = arith.cmpi slt, %2, %c0_i32_2 : i32
    %10 = vector.broadcast %9 : i1 to vector<8x256xi1>
    %11 = vector.broadcast %10 : vector<8x256xi1> to vector<8x256xi1>
    %12 = arith.xori %8, %11 : vector<8x256xi1>
    %13 = arith.andi %12, %6 : vector<8x256xi1>
    %14 = vector.broadcast %2 : i32 to vector<8x256xi32>
    %15 = arith.addi %4, %14 : vector<8x256xi32>
    %16 = arith.select %13, %15, %4 : vector<8x256xi1>, vector<8x256xi32>
    %c2_i32 = arith.constant 2 : i32
    %17 = vector.broadcast %c2_i32 : i32 to vector<8x256xi32>
    %18 = arith.cmpi sge, %16, %17 : vector<8x256xi32>
    %c1_i32_3 = arith.constant 1 : i32
    %19 = vector.broadcast %c1_i32_3 : i32 to vector<8x256xi32>
    %20 = arith.cmpi sge, %16, %19 : vector<8x256xi32>
    %c255_i32 = arith.constant 255 : i32
    %21 = vector.broadcast %c255_i32 : i32 to vector<8x256xi32>
    %22 = arith.cmpi slt, %16, %21 : vector<8x256xi32>
    %c254_i32 = arith.constant 254 : i32
    %23 = vector.broadcast %c254_i32 : i32 to vector<8x256xi32>
    %24 = arith.cmpi slt, %16, %23 : vector<8x256xi32>
    %cst = arith.constant 1.000000e+00 : f32
    %25 = vector.broadcast %cst : f32 to vector<1x256xf32>
    %c0 = arith.constant 0 : index
    %26 = memref.load %arg6[%c0] : memref<3xf32, #tpu.memory_space<smem>>
    %c1 = arith.constant 1 : index
    %27 = memref.load %arg6[%c1] : memref<3xf32, #tpu.memory_space<smem>>
    %c2 = arith.constant 2 : index
    %28 = memref.load %arg6[%c2] : memref<3xf32, #tpu.memory_space<smem>>
    %c0_4 = arith.constant 0 : index
    %c0_5 = arith.constant 0 : index
    %c0_6 = arith.constant 0 : index
    %29 = vector.load %arg5[%c0_4, %c0_5, %c0_6] : memref<3x8x41xf32, #tpu.memory_space<vmem>>, vector<1x8x41xf32>
    %30 = vector.shape_cast %29 : vector<1x8x41xf32> to vector<8x41xf32>
    %c1_7 = arith.constant 1 : index
    %c0_8 = arith.constant 0 : index
    %c0_9 = arith.constant 0 : index
    %31 = vector.load %arg5[%c1_7, %c0_8, %c0_9] : memref<3x8x41xf32, #tpu.memory_space<vmem>>, vector<1x8x41xf32>
    %32 = vector.shape_cast %31 : vector<1x8x41xf32> to vector<8x41xf32>
    %33 = vector.extract_strided_slice %32 {offsets = [0, 0], sizes = [8, 25], strides = [1, 1]} : vector<8x41xf32> to vector<8x25xf32>
    %c2_10 = arith.constant 2 : index
    %c0_11 = arith.constant 0 : index
    %c0_12 = arith.constant 0 : index
    %34 = vector.load %arg5[%c2_10, %c0_11, %c0_12] : memref<3x8x41xf32, #tpu.memory_space<vmem>>, vector<1x8x41xf32>
    %35 = vector.shape_cast %34 : vector<1x8x41xf32> to vector<8x41xf32>
    %36 = vector.extract_strided_slice %35 {offsets = [0, 0], sizes = [8, 25], strides = [1, 1]} : vector<8x41xf32> to vector<8x25xf32>
    %c0_13 = arith.constant 0 : index
    %c0_14 = arith.constant 0 : index
    %c0_15 = arith.constant 0 : index
    %37 = vector.load %arg1[%c0_13, %c0_14, %c0_15] : memref<1x8x256xf32, #tpu.memory_space<vmem>>, vector<1x8x256xf32>
    %38 = vector.shape_cast %37 : vector<1x8x256xf32> to vector<8x256xf32>
    %c0_16 = arith.constant 0 : index
    %c0_17 = arith.constant 0 : index
    %c0_18 = arith.constant 0 : index
    %39 = vector.load %arg2[%c0_16, %c0_17, %c0_18] : memref<1x8x256xf32, #tpu.memory_space<vmem>>, vector<1x8x256xf32>
    %40 = vector.shape_cast %39 : vector<1x8x256xf32> to vector<8x256xf32>
    %41 = arith.addf %38, %40 : vector<8x256xf32>
    %cst_19 = arith.constant 0.707106769 : f32
    %42 = vector.broadcast %cst_19 : f32 to vector<8x256xf32>
    %43 = arith.mulf %41, %42 : vector<8x256xf32>
    %cst_20 = arith.constant 0.000000e+00 : f32
    %44 = vector.broadcast %cst_20 : f32 to vector<8x256xf32>
    %45 = arith.cmpf oge, %43, %44 : vector<8x256xf32>
    %46 = vector.broadcast %26 : f32 to vector<8x256xf32>
    %47 = arith.mulf %46, %43 : vector<8x256xf32>
    %48 = arith.select %45, %43, %47 : vector<8x256xi1>, vector<8x256xf32>
    %c2_i32_21 = arith.constant 2 : i32
    %49 = tpu.dynamic_rotate %48 by %c2_i32_21 dim 1 : vector<8x256xf32>, i32 -> vector<8x256xf32>
    %cst_22 = arith.constant 0.000000e+00 : f32
    %50 = vector.broadcast %cst_22 : f32 to vector<8x256xf32>
    %51 = arith.select %18, %49, %50 : vector<8x256xi1>, vector<8x256xf32>
    %c1_i32_23 = arith.constant 1 : i32
    %52 = tpu.dynamic_rotate %48 by %c1_i32_23 dim 1 : vector<8x256xf32>, i32 -> vector<8x256xf32>
    %cst_24 = arith.constant 0.000000e+00 : f32
    %53 = vector.broadcast %cst_24 : f32 to vector<8x256xf32>
    %54 = arith.select %20, %52, %53 : vector<8x256xi1>, vector<8x256xf32>
    %c255_i32_25 = arith.constant 255 : i32
    %55 = tpu.dynamic_rotate %48 by %c255_i32_25 dim 1 : vector<8x256xf32>, i32 -> vector<8x256xf32>
    %cst_26 = arith.constant 0.000000e+00 : f32
    %56 = vector.broadcast %cst_26 : f32 to vector<8x256xf32>
    %57 = arith.select %22, %55, %56 : vector<8x256xi1>, vector<8x256xf32>
    %c254_i32_27 = arith.constant 254 : i32
    %58 = tpu.dynamic_rotate %48 by %c254_i32_27 dim 1 : vector<8x256xf32>, i32 -> vector<8x256xf32>
    %cst_28 = arith.constant 0.000000e+00 : f32
    %59 = vector.broadcast %cst_28 : f32 to vector<8x256xf32>
    %60 = arith.select %24, %58, %59 : vector<8x256xi1>, vector<8x256xf32>
    %61 = tpu.concatenate %51, %54, %48, %57, %60, %25 in 0 : vector<8x256xf32>, vector<8x256xf32>, vector<8x256xf32>, vector<8x256xf32>, vector<8x256xf32>, vector<1x256xf32> -> vector<41x256xf32>
    %cst_29 = arith.constant dense<0.000000e+00> : vector<8x256xf32>
    %62 = tpu.matmul %30, %61, %cst_29 {dimension_numbers = #tpu.dot_dimension_numbers<[1], [0], [0], [1], [0, 0, 1, 1], [], []>} : vector<8x41xf32>, vector<41x256xf32>, vector<8x256xf32> -> vector<8x256xf32>
    %c0_30 = arith.constant 0 : index
    %c0_31 = arith.constant 0 : index
    %c0_32 = arith.constant 0 : index
    %63 = vector.load %arg3[%c0_30, %c0_31, %c0_32] : memref<1x8x256xf32, #tpu.memory_space<vmem>>, vector<1x8x256xf32>
    %64 = vector.shape_cast %63 : vector<1x8x256xf32> to vector<8x256xf32>
    %65 = arith.addf %62, %64 : vector<8x256xf32>
    %cst_33 = arith.constant 0.707106769 : f32
    %66 = vector.broadcast %cst_33 : f32 to vector<8x256xf32>
    %67 = arith.mulf %65, %66 : vector<8x256xf32>
    %c0_34 = arith.constant 0 : index
    %c0_35 = arith.constant 0 : index
    %c0_36 = arith.constant 0 : index
    %68 = vector.load %arg4[%c0_34, %c0_35, %c0_36] : memref<1x16x1xf32, #tpu.memory_space<vmem>>, vector<1x16x1xf32>
    %69 = vector.shape_cast %68 : vector<1x16x1xf32> to vector<16x1xf32>
    %70 = vector.extract_strided_slice %69 {offsets = [0, 0], sizes = [8, 1], strides = [1, 1]} : vector<16x1xf32> to vector<8x1xf32>
    %71 = vector.extract_strided_slice %69 {offsets = [8, 0], sizes = [8, 1], strides = [1, 1]} : vector<16x1xf32> to vector<8x1xf32>
    %72 = vector.broadcast %70 : vector<8x1xf32> to vector<8x256xf32>
    %73 = arith.mulf %72, %67 : vector<8x256xf32>
    %74 = vector.broadcast %71 : vector<8x1xf32> to vector<8x256xf32>
    %75 = arith.addf %73, %74 : vector<8x256xf32>
    %cst_37 = arith.constant 0.000000e+00 : f32
    %76 = vector.broadcast %cst_37 : f32 to vector<8x256xf32>
    %77 = arith.cmpf oge, %75, %76 : vector<8x256xf32>
    %78 = vector.broadcast %27 : f32 to vector<8x256xf32>
    %79 = arith.mulf %78, %75 : vector<8x256xf32>
    %80 = arith.select %77, %75, %79 : vector<8x256xi1>, vector<8x256xf32>
    %c1_i32_38 = arith.constant 1 : i32
    %81 = tpu.dynamic_rotate %80 by %c1_i32_38 dim 1 : vector<8x256xf32>, i32 -> vector<8x256xf32>
    %cst_39 = arith.constant 0.000000e+00 : f32
    %82 = vector.broadcast %cst_39 : f32 to vector<8x256xf32>
    %83 = arith.select %20, %81, %82 : vector<8x256xi1>, vector<8x256xf32>
    %c255_i32_40 = arith.constant 255 : i32
    %84 = tpu.dynamic_rotate %80 by %c255_i32_40 dim 1 : vector<8x256xf32>, i32 -> vector<8x256xf32>
    %cst_41 = arith.constant 0.000000e+00 : f32
    %85 = vector.broadcast %cst_41 : f32 to vector<8x256xf32>
    %86 = arith.select %22, %84, %85 : vector<8x256xi1>, vector<8x256xf32>
    %87 = tpu.concatenate %83, %80, %86, %25 in 0 : vector<8x256xf32>, vector<8x256xf32>, vector<8x256xf32>, vector<1x256xf32> -> vector<25x256xf32>
    %cst_42 = arith.constant dense<0.000000e+00> : vector<8x256xf32>
    %88 = tpu.matmul %33, %87, %cst_42 {dimension_numbers = #tpu.dot_dimension_numbers<[1], [0], [0], [1], [0, 0, 1, 1], [], []>} : vector<8x25xf32>, vector<25x256xf32>, vector<8x256xf32> -> vector<8x256xf32>
    %cst_43 = arith.constant 0.000000e+00 : f32
    %89 = vector.broadcast %cst_43 : f32 to vector<8x256xf32>
    %90 = arith.cmpf oge, %88, %89 : vector<8x256xf32>
    %91 = vector.broadcast %28 : f32 to vector<8x256xf32>
    %92 = arith.mulf %91, %88 : vector<8x256xf32>
    %93 = arith.select %90, %88, %92 : vector<8x256xi1>, vector<8x256xf32>
    %c1_i32_44 = arith.constant 1 : i32
    %94 = tpu.dynamic_rotate %93 by %c1_i32_44 dim 1 : vector<8x256xf32>, i32 -> vector<8x256xf32>
    %cst_45 = arith.constant 0.000000e+00 : f32
    %95 = vector.broadcast %cst_45 : f32 to vector<8x256xf32>
    %96 = arith.select %20, %94, %95 : vector<8x256xi1>, vector<8x256xf32>
    %c255_i32_46 = arith.constant 255 : i32
    %97 = tpu.dynamic_rotate %93 by %c255_i32_46 dim 1 : vector<8x256xf32>, i32 -> vector<8x256xf32>
    %cst_47 = arith.constant 0.000000e+00 : f32
    %98 = vector.broadcast %cst_47 : f32 to vector<8x256xf32>
    %99 = arith.select %22, %97, %98 : vector<8x256xi1>, vector<8x256xf32>
    %100 = tpu.concatenate %96, %93, %99, %25 in 0 : vector<8x256xf32>, vector<8x256xf32>, vector<8x256xf32>, vector<1x256xf32> -> vector<25x256xf32>
    %cst_48 = arith.constant dense<0.000000e+00> : vector<8x256xf32>
    %101 = tpu.matmul %36, %100, %cst_48 {dimension_numbers = #tpu.dot_dimension_numbers<[1], [0], [0], [1], [0, 0, 1, 1], [], []>} : vector<8x25xf32>, vector<25x256xf32>, vector<8x256xf32> -> vector<8x256xf32>
    %102 = arith.addf %43, %101 : vector<8x256xf32>
    %cst_49 = arith.constant 0.707106769 : f32
    %103 = vector.broadcast %cst_49 : f32 to vector<8x256xf32>
    %104 = arith.mulf %102, %103 : vector<8x256xf32>
    %c0_50 = arith.constant 0 : index
    %c0_51 = arith.constant 0 : index
    %c0_52 = arith.constant 0 : index
    %105 = vector.load %arg7[%c0_50, %c0_51, %c0_52] : memref<1x8x256xf32, #tpu.memory_space<vmem>>, vector<1x8x256xf32>
    %106 = vector.shape_cast %105 : vector<1x8x256xf32> to vector<8x256xf32>
    %107 = vector.shape_cast %104 : vector<8x256xf32> to vector<1x8x256xf32>
    tpu.vector_store %arg7[%c0_50, %c0_51, %c0_52], %107 {strides = array<i32>} : memref<1x8x256xf32, #tpu.memory_space<vmem>>, vector<1x8x256xf32>,
    %c0_53 = arith.constant 0 : index
    %c0_54 = arith.constant 0 : index
    %c0_55 = arith.constant 0 : index
    %108 = vector.load %arg8[%c0_53, %c0_54, %c0_55] : memref<1x8x256xf32, #tpu.memory_space<vmem>>, vector<1x8x256xf32>
    %109 = vector.shape_cast %108 : vector<1x8x256xf32> to vector<8x256xf32>
    %110 = vector.shape_cast %62 : vector<8x256xf32> to vector<1x8x256xf32>
    tpu.vector_store %arg8[%c0_53, %c0_54, %c0_55], %110 {strides = array<i32>} : memref<1x8x256xf32, #tpu.memory_space<vmem>>, vector<1x8x256xf32>,
    return
  }
  func.func @transform_0(%arg0: i32) -> (i32, i32, i32) {
    %c0_i32 = arith.constant 0 : i32
    %c0_i32_0 = arith.constant 0 : i32
    %c0_i32_1 = arith.constant 0 : i32
    return %arg0, %c0_i32, %c0_i32_0 : i32, i32, i32
  }
  func.func @transform_1(%arg0: i32) -> (i32, i32, i32) {
    %c0_i32 = arith.constant 0 : i32
    %c0_i32_0 = arith.constant 0 : i32
    %c0_i32_1 = arith.constant 0 : i32
    return %arg0, %c0_i32, %c0_i32_0 : i32, i32, i32
  }
  func.func @transform_2(%arg0: i32) -> (i32, i32, i32) {
    %c0_i32 = arith.constant 0 : i32
    %c0_i32_0 = arith.constant 0 : i32
    %c0_i32_1 = arith.constant 0 : i32
    return %arg0, %c0_i32, %c0_i32_0 : i32, i32, i32
  }
  func.func @transform_3(%arg0: i32) -> (i32, i32, i32) {
    %c0_i32 = arith.constant 0 : i32
    %c0_i32_0 = arith.constant 0 : i32
    %c0_i32_1 = arith.constant 0 : i32
    return %arg0, %c0_i32, %c0_i32_0 : i32, i32, i32
  }
  func.func @transform_4(%arg0: i32) -> (i32, i32, i32) {
    %c0_i32 = arith.constant 0 : i32
    %c0_i32_0 = arith.constant 0 : i32
    %c0_i32_1 = arith.constant 0 : i32
    %c0_i32_2 = arith.constant 0 : i32
    return %c0_i32, %c0_i32_0, %c0_i32_1 : i32, i32, i32
  }
  func.func @transform_5(%arg0: i32) -> i32 {
    %c0_i32 = arith.constant 0 : i32
    %c0_i32_0 = arith.constant 0 : i32
    return %c0_i32 : i32
  }
  func.func @transform_6(%arg0: i32) -> (i32, i32, i32) {
    %c0_i32 = arith.constant 0 : i32
    %c0_i32_0 = arith.constant 0 : i32
    %c0_i32_1 = arith.constant 0 : i32
    return %arg0, %c0_i32, %c0_i32_0 : i32, i32, i32
  }
  func.func @transform_7(%arg0: i32) -> (i32, i32, i32) {
    %c0_i32 = arith.constant 0 : i32
    %c0_i32_0 = arith.constant 0 : i32
    %c0_i32_1 = arith.constant 0 : i32
    return %arg0, %c0_i32, %c0_i32_0 : i32, i32, i32
  }
}

</mosaic_0001>

<llo_original>
// kernel: conv_block_apply.1
$region0: #{conv_block_apply.1}
  #allocation0 [shape = 'u32[]', space=smem, size = 0x4, offset = 0x4, fixed_abs, tag = 'smem constant byte address 0x4 - core index']
  #allocation1 [shape = 'u32[144,128]{1,0:T(1,128)}', space=vmem, size = 0x12000, scoped, tag = 'internal scratch']
  %s0 = inlined_call_operand.vmem [shape: f32[2,8,256], index: 0, kind: input, shape index: {}]
  %s1 = inlined_call_operand.vmem [shape: f32[2,8,256], index: 1, kind: input, shape index: {}]
  %s2 = inlined_call_operand.vmem [shape: f32[2,8,256], index: 2, kind: input, shape index: {}]
  %s3 = inlined_call_operand.vmem [shape: f32[2,16,1], index: 3, kind: input, shape index: {}]
  %s4 = inlined_call_operand.vmem [shape: f32[3,8,41], index: 4, kind: input, shape index: {}]
  %s5 = inlined_call_operand.vmem [shape: f32[3], index: 5, kind: input, shape index: {}]
  %s6 = inlined_call_operand.vmem [shape: f32[2,8,256], index: 6, kind: output, shape index: {0}]
  %s7 = inlined_call_operand.hbm [shape: f32[2,8,256], index: 7, kind: output, shape index: {1}]
  %8 = xla_tuple %s6, %s7
  %s9 = sld [smem:[#allocation0]]
  $region69: #{conv_block_apply.1} parent=0
    _
  %s11 = ssub.s32 1, %s9
  %s12 = scalar_select 0, %s11, %s9
  $region1: #{conv_block_apply.1} parent=0
    #allocation2 [shape = 'u8[512]{0}', space=smem, size = 0x200, scoped, tag = 'input window, operand 5, single buffered']
    #allocation3 [shape = 's32[2]{0}', space=sflag, size = 0x8, scoped, tag = 'scoped memory for conv_block_apply.1']
    #allocation4 [shape = 's32[2]{0}', space=sflag, size = 0x8, scoped, tag = 'scoped memory for conv_block_apply.1']
    #allocation5 [shape = 'u8[16384]{0}', space=vmem, size = 0x4000, scoped, tag = 'output window, operand 1']
    %13 = vsyncpa [#allocation4], 0
    %14 = vsyncpa [#allocation3], 0
    %s15 = scalar_lea.sflag [#allocation3], 1
    %16 = vsyncpa %s15, 0
    loop: start=0, step=1, limit=4
    $region2: #{conv_block_apply.1} parent=1 // loop_pre_header
      _
    $region3: #{conv_block_apply.1} parent=1 // loop_header
      %s18 = sphi 0, %s22
      %p19 = scmp.ge.s32.totalorder %s18, 4
      %s28 = sphi 0, %s30
      %s31 = sphi 0, %s28
      %s32 = sphi 0, %s31
      %s48 = sphi 0, %s32
      %s54 = sphi 0, %s56
      %s57 = sphi 0, %s54
      %s58 = sphi 0, %s57
      %s74 = sphi 0, %s58
      %s80 = sphi 0, %s82
      %s83 = sphi 0, %s80
      %s84 = sphi 0, %s83
      %s100 = sphi 0, %s84
      %s106 = sphi 0, %s108
      %s109 = sphi 0, %s106
      %s110 = sphi 0, %s109
      %s126 = sphi 0, %s110
      %s130 = sphi 0, %s130
      %s132 = sphi 0, %s130
      %s133 = sphi 0, %s132
      %s147 = sphi 0, %s133
      %s151 = sphi 0, %s151
      %s153 = sphi 0, %s151
      %s154 = sphi 0, %s153
      %s168 = sphi 0, %s154
      %s174 = sphi 0, %s176
      %s177 = sphi 0, %s174
      %s178 = sphi 0, %s177
      %s194 = sphi 0, %s178
      %s200 = sphi 0, %s202
      %s203 = sphi 0, %s200
      %s204 = sphi 0, %s203
      %s220 = sphi 0, %s204
    $region4: #{conv_block_apply.1} parent=1 // loop_header_branch
      %21 = sbr.rel (%p19) target = $region8
    $region5: #{conv_block_apply.1} parent=1 // loop_body
      %s23 = ssub.s32 %s18, 1
      %s24 = ssub.s32 %s18, 2
      %s25 = sadd.s32 %s18, 1
      %s26 = ssub.s32 %s18, %s25
      %p27 = scmp.eq.s32.totalorder %s26, 0
      %s29 = sadd.s32 %s28, 1
      %s30 = scalar_select %p27, %s28, %s29
      %p33 = pneg %p27
      %p34 = scmp.eq.s32.totalorder %s18, 1
      %p35 = por %p33, %p34
      %p36 = scmp.ne.s32.totalorder %s28, %s31
      %p37 = scmp.eq.s32.totalorder %s18, 0
      %p38 = por %p36, %p37
      %p39 = scmp.ne.s32.totalorder %s28, %s31
      %p40 = scmp.eq.s32.totalorder %s23, 1
      %p41 = por %p39, %p40
      %p42 = scmp.ne.s32.totalorder %s31, %s32
      %p43 = scmp.eq.s32.totalorder %s23, 0
      %p44 = por %p42, %p43
      %p45 = scmp.ne.s32.totalorder %s31, %s32
      %p46 = scmp.eq.s32.totalorder %s24, 1
      %p47 = por %p45, %p46
      %p49 = scmp.ne.s32.totalorder %s32, %s48
      %p50 = scmp.eq.s32.totalorder %s24, 0
      %p51 = por %p49, %p50
      %s52 = ssub.s32 %s18, %s25
      %p53 = scmp.eq.s32.totalorder %s52, 0
      %s55 = sadd.s32 %s54, 1
      %s56 = scalar_select %p53, %s54, %s55
      %p59 = pneg %p53
      %p60 = scmp.eq.s32.totalorder %s18, 1
      %p61 = por %p59, %p60
      %p62 = scmp.ne.s32.totalorder %s54, %s57
      %p63 = scmp.eq.s32.totalorder %s18, 0
      %p64 = por %p62, %p63
      %p65 = scmp.ne.s32.totalorder %s54, %s57
      %p66 = scmp.eq.s32.totalorder %s23, 1
      %p67 = por %p65, %p66
      %p68 = scmp.ne.s32.totalorder %s57, %s58
      %p69 = scmp.eq.s32.totalorder %s23, 0
      %p70 = por %p68, %p69
      %p71 = scmp.ne.s32.totalorder %s57, %s58
      %p72 = scmp.eq.s32.totalorder %s24, 1
      %p73 = por %p71, %p72
      %p75 = scmp.ne.s32.totalorder %s58, %s74
      %p76 = scmp.eq.s32.totalorder %s24, 0
      %p77 = por %p75, %p76
      %s78 = ssub.s32 %s18, %s25
      %p79 = scmp.eq.s32.totalorder %s78, 0
      %s81 = sadd.s32 %s80, 1
      %s82 = scalar_select %p79, %s80, %s81
      %p85 = pneg %p79
      %p86 = scmp.eq.s32.totalorder %s18, 1
      %p87 = por %p85, %p86
      %p88 = scmp.ne.s32.totalorder %s80, %s83
      %p89 = scmp.eq.s32.totalorder %s18, 0
      %p90 = por %p88, %p89
      %p91 = scmp.ne.s32.totalorder %s80, %s83
      %p92 = scmp.eq.s32.totalorder %s23, 1
      %p93 = por %p91, %p92
      %p94 = scmp.ne.s32.totalorder %s83, %s84
      %p95 = scmp.eq.s32.totalorder %s23, 0
      %p96 = por %p94, %p95
      %p97 = scmp.ne.s32.totalorder %s83, %s84
      %p98 = scmp.eq.s32.totalorder %s24, 1
      %p99 = por %p97, %p98
      %p101 = scmp.ne.s32.totalorder %s84, %s100
      %p102 = scmp.eq.s32.totalorder %s24, 0
      %p103 = por %p101, %p102
      %s104 = ssub.s32 %s18, %s25
      %p105 = scmp.eq.s32.totalorder %s104, 0
      %s107 = sadd.s32 %s106, 1
      %s108 = scalar_select %p105, %s106, %s107
      %p111 = pneg %p105
      %p112 = scmp.eq.s32.totalorder %s18, 1
      %p113 = por %p111, %p112
      %p114 = scmp.ne.s32.totalorder %s106, %s109
      %p115 = scmp.eq.s32.totalorder %s18, 0
      %p116 = por %p114, %p115
      %p117 = scmp.ne.s32.totalorder %s106, %s109
      %p118 = scmp.eq.s32.totalorder %s23, 1
      %p119 = por %p117, %p118
      %p120 = scmp.ne.s32.totalorder %s109, %s110
      %p121 = scmp.eq.s32.totalorder %s23, 0
      %p122 = por %p120, %p121
      %p123 = scmp.ne.s32.totalorder %s109, %s110
      %p124 = scmp.eq.s32.totalorder %s24, 1
      %p125 = por %p123, %p124
      %p127 = scmp.ne.s32.totalorder %s110, %s126
      %p128 = scmp.eq.s32.totalorder %s24, 0
      %p129 = por %p127, %p128
      %s131 = sadd.s32 %s130, 1
      %p134 = scmp.eq.s32.totalorder %s18, 1
      %p135 = scmp.ne.s32.totalorder %s130, %s132
      %p136 = scmp.eq.s32.totalorder %s18, 0
      %p137 = por %p135, %p136
      %p138 = scmp.ne.s32.totalorder %s130, %s132
      %p139 = scmp.eq.s32.totalorder %s23, 1
      %p140 = por %p138, %p139
      %p141 = scmp.ne.s32.totalorder %s132, %s133
      %p142 = scmp.eq.s32.totalorder %s23, 0
      %p143 = por %p141, %p142
      %p144 = scmp.ne.s32.totalorder %s132, %s133
      %p145 = scmp.eq.s32.totalorder %s24, 1
      %p146 = por %p144, %p145
      %p148 = scmp.ne.s32.totalorder %s133, %s147
      %p149 = scmp.eq.s32.totalorder %s24, 0
      %p150 = por %p148, %p149
      %s152 = sadd.s32 %s151, 1
      %p155 = scmp.eq.s32.totalorder %s18, 1
      %p156 = scmp.ne.s32.totalorder %s151, %s153
      %p157 = scmp.eq.s32.totalorder %s18, 0
      %p158 = por %p156, %p157
      %p159 = scmp.ne.s32.totalorder %s151, %s153
      %p160 = scmp.eq.s32.totalorder %s23, 1
      %p161 = por %p159, %p160
      %p162 = scmp.ne.s32.totalorder %s153, %s154
      %p163 = scmp.eq.s32.totalorder %s23, 0
      %p164 = por %p162, %p163
      %p165 = scmp.ne.s32.totalorder %s153, %s154
      %p166 = scmp.eq.s32.totalorder %s24, 1
      %p167 = por %p165, %p166
      %p169 = scmp.ne.s32.totalorder %s154, %s168
      %p170 = scmp.eq.s32.totalorder %s24, 0
      %p171 = por %p169, %p170
      %s172 = ssub.s32 %s18, %s25
      %p173 = scmp.eq.s32.totalorder %s172, 0
      %s175 = sadd.s32 %s174, 1
      %s176 = scalar_select %p173, %s174, %s175
      %p179 = pneg %p173
      %p180 = scmp.eq.s32.totalorder %s18, 1
      %p181 = por %p179, %p180
      %p182 = scmp.ne.s32.totalorder %s174, %s177
      %p183 = scmp.eq.s32.totalorder %s18, 0
      %p184 = por %p182, %p183
      %p185 = scmp.ne.s32.totalorder %s174, %s177
      %p186 = scmp.eq.s32.totalorder %s23, 1
      %p187 = por %p185, %p186
      %p188 = scmp.ne.s32.totalorder %s177, %s178
      %p189 = scmp.eq.s32.totalorder %s23, 0
      %p190 = por %p188, %p189
      %p191 = scmp.ne.s32.totalorder %s177, %s178
      %p192 = scmp.eq.s32.totalorder %s24, 1
      %p193 = por %p191, %p192
      %p195 = scmp.ne.s32.totalorder %s178, %s194
      %p196 = scmp.eq.s32.totalorder %s24, 0
      %p197 = por %p195, %p196
      %s198 = ssub.s32 %s18, %s25
      %p199 = scmp.eq.s32.totalorder %s198, 0
      %s201 = sadd.s32 %s200, 1
      %s202 = scalar_select %p199, %s200, %s201
      %p205 = pneg %p199
      %p206 = scmp.eq.s32.totalorder %s18, 1
      %p207 = por %p205, %p206
      %p208 = scmp.ne.s32.totalorder %s200, %s203
      %p209 = scmp.eq.s32.totalorder %s18, 0
      %p210 = por %p208, %p209
      %p211 = scmp.ne.s32.totalorder %s200, %s203
      %p212 = scmp.eq.s32.totalorder %s23, 1
      %p213 = por %p211, %p212
      %p214 = scmp.ne.s32.totalorder %s203, %s204
      %p215 = scmp.eq.s32.totalorder %s23, 0
      %p216 = por %p214, %p215
      %p217 = scmp.ne.s32.totalorder %s203, %s204
      %p218 = scmp.eq.s32.totalorder %s24, 1
      %p219 = por %p217, %p218
      %p221 = scmp.ne.s32.totalorder %s204, %s220
      %p222 = scmp.eq.s32.totalorder %s24, 0
      %p223 = por %p221, %p222
      %p224 = scmp.le.s32.totalorder 1, %s18
      %p225 = scmp.lt.s32.totalorder %s18, 3
      %p226 = pnand %p224, %p225
      %p227 = pneg %p226
      // Predicated region
      $region9: #{conv_block_apply.1} parent=5 // pred_check
        _
      $region10: #{conv_block_apply.1} parent=5 // pred_check_branch
        %229 = sbr.rel (%p226) target = $region12
      $region11: #{conv_block_apply.1} parent=5 // pred_region
        %s230 = ssub.s32 %s18, 1
        // Predicated region
        $region13: #{conv_block_apply.1} parent=11 // pred_check
          %p231 = pneg %p143
        $region14: #{conv_block_apply.1} parent=11 // pred_check_branch
          %233 = sbr.rel (%p231) target = $region16
        $region15: #{conv_block_apply.1} parent=11 // pred_region
          _
        $region16: #{conv_block_apply.1} parent=11 // pred_fallthru
          _
        // Predicated region
        $region17: #{conv_block_apply.1} parent=11 // pred_check
          %p234 = pneg %p164
        $region18: #{conv_block_apply.1} parent=11 // pred_check_branch
          %236 = sbr.rel (%p234) target = $region20
        $region19: #{conv_block_apply.1} parent=11 // pred_region
          %s238 = ssub.s32 16, 16
          %239 = vsyncadd [#allocation4], %s238
          %s241 = sshll.u32 %s5, 4
          %s242 = int_to_ptr.vmem [resolvable:$true] %s241
          %244 = dma.vmem_to_smem %s242, 16, [#allocation2], [#allocation4]
        $region20: #{conv_block_apply.1} parent=11 // pred_fallthru
          _
      $region12: #{conv_block_apply.1} parent=5 // pred_fallthru
        _
      %p245 = scmp.lt.s32.totalorder %s18, 2
      // Predicated region
      $region21: #{conv_block_apply.1} parent=5 // pred_check
        %p246 = pneg %p245
      $region22: #{conv_block_apply.1} parent=5 // pred_check_branch
        %248 = sbr.rel (%p246) target = $region24
      $region23: #{conv_block_apply.1} parent=5 // pred_region
        // Predicated region
        $region25: #{conv_block_apply.1} parent=23 // pred_check
          %p249 = pneg %p38
        $region26: #{conv_block_apply.1} parent=23 // pred_check_branch
          %251 = sbr.rel (%p249) target = $region28
        $region27: #{conv_block_apply.1} parent=23 // pred_region
          %p252 = scmp.lt.s32.totalorder %s18, 1
          %s253 = scalar_select %p252, %s18, 1
          %s254 = smul.addr %s253, 2
          %s255 = smul.addr %s254, 8
          %s256 = scalar_lea.vmem %s0, %s255
        $region28: #{conv_block_apply.1} parent=23 // pred_fallthru
          _
        // Predicated region
        $region29: #{conv_block_apply.1} parent=23 // pred_check
          %p257 = pneg %p64
        $region30: #{conv_block_apply.1} parent=23 // pred_check_branch
          %259 = sbr.rel (%p257) target = $region32
        $region31: #{conv_block_apply.1} parent=23 // pred_region
          %p260 = scmp.lt.s32.totalorder %s18, 1
          %s261 = scalar_select %p260, %s18, 1
          %s262 = smul.addr %s261, 2
          %s263 = smul.addr %s262, 8
          %s264 = scalar_lea.vmem %s1, %s263
        $region32: #{conv_block_apply.1} parent=23 // pred_fallthru
          _
        // Predicated region
        $region33: #{conv_block_apply.1} parent=23 // pred_check
          %p265 = pneg %p90
        $region34: #{conv_block_apply.1} parent=23 // pred_check_branch
          %267 = sbr.rel (%p265) target = $region36
        $region35: #{conv_block_apply.1} parent=23 // pred_region
          %p268 = scmp.lt.s32.totalorder %s18, 1
          %s269 = scalar_select %p268, %s18, 1
          %s270 = smul.addr %s269, 2
          %s271 = smul.addr %s270, 8
          %s272 = scalar_lea.vmem %s2, %s271
        $region36: #{conv_block_apply.1} parent=23 // pred_fallthru
          _
        // Predicated region
        $region37: #{conv_block_apply.1} parent=23 // pred_check
          %p273 = pneg %p116
        $region38: #{conv_block_apply.1} parent=23 // pred_check_branch
          %275 = sbr.rel (%p273) target = $region40
        $region39: #{conv_block_apply.1} parent=23 // pred_region
          %p276 = scmp.lt.s32.totalorder %s18, 1
          %s277 = scalar_select %p276, %s18, 1
          %s278 = smul.addr %s277, 2
          %s279 = smul.addr %s278, 8
          %s280 = scalar_lea.vmem %s3, %s279
        $region40: #{conv_block_apply.1} parent=23 // pred_fallthru
          _
      $region24: #{conv_block_apply.1} parent=5 // pred_fallthru
        _
      %p281 = scmp.le.s32.totalorder 1, %s18
      %p282 = scmp.lt.s32.totalorder %s18, 3
      %p283 = pnand %p281, %p282
      %p284 = pneg %p283
      // Predicated region
      $region41: #{conv_block_apply.1} parent=5 // pred_check
        _
      $region42: #{conv_block_apply.1} parent=5 // pred_check_branch
        %286 = sbr.rel (%p283) target = $region44
      $region43: #{conv_block_apply.1} parent=5 // pred_region
        %s287 = ssub.s32 %s18, 1
        // Predicated region
        $region45: #{conv_block_apply.1} parent=43 // pred_check
          %p288 = pneg %p164
        $region46: #{conv_block_apply.1} parent=43 // pred_check_branch
          %290 = sbr.rel (%p288) target = $region48
        $region47: #{conv_block_apply.1} parent=43 // pred_region
          %291 = dma.done [#allocation4], 16
        $region48: #{conv_block_apply.1} parent=43 // pred_fallthru
          _
        %292 = sfence
        %p293 = scmp.lt.s32.totalorder %s23, 1
        %s294 = scalar_select %p293, %s23, 1
        %s295 = smul.addr %s294, 2
        %s296 = smul.addr %s295, 8
        %s297 = scalar_lea.vmem %s0, %s296
        %p298 = pneg %p44
        %p299 = pneg %p41
        %p300 = scmp.lt.s32.totalorder %s23, 1
        %s301 = scalar_select %p300, %s23, 1
        %s302 = smul.addr %s301, 2
        %s303 = smul.addr %s302, 8
        %s304 = scalar_lea.vmem %s1, %s303
        %p305 = pneg %p70
        %p306 = pneg %p67
        %p307 = scmp.lt.s32.totalorder %s23, 1
        %s308 = scalar_select %p307, %s23, 1
        %s309 = smul.addr %s308, 2
        %s310 = smul.addr %s309, 8
        %s311 = scalar_lea.vmem %s2, %s310
        %p312 = pneg %p96
        %p313 = pneg %p93
        %p314 = scmp.lt.s32.totalorder %s23, 1
        %s315 = scalar_select %p314, %s23, 1
        %s316 = smul.addr %s315, 2
        %s317 = smul.addr %s316, 8
        %s318 = scalar_lea.vmem %s3, %s317
        %p319 = pneg %p122
        %p320 = pneg %p119
        %p321 = pneg %p143
        %p322 = pneg %p140
        %p323 = pneg %p164
        %p324 = pneg %p161
        %p325 = pneg %p190
        %p326 = pneg %p187
        %p327 = scmp.lt.s32.totalorder %s23, 1
        %s328 = scalar_select %p327, %s23, 1
        %s329 = smul.addr %s328, 2
        %s330 = smul.addr %s329, 8
        %s331 = scalar_lea.vmem %s6, %s330
        %p332 = pneg %p216
        %p333 = pneg %p213
        %s334 = sand.u32 %s203, 1
        %s335 = scalar_lea.sflag [#allocation3], %s334
        %s336 = sand.u32 %s203, 1
        %s337 = smul.addr %s336, 16
        %s338 = scalar_lea.vmem [#allocation5], %s337
        %p339 = scmp.lt.s32.totalorder %s23, 1
        %s340 = scalar_select %p339, %s23, 1
        %s341 = smul.addr %s340, 2
        %s342 = smul.addr %s341, 8
        %s343 = scalar_lea.vmem %s0, %s342
        %p344 = scmp.lt.s32.totalorder %s23, 1
        %s345 = scalar_select %p344, %s23, 1
        %s346 = smul.addr %s345, 2
        %s347 = smul.addr %s346, 8
        %s348 = scalar_lea.vmem %s1, %s347
        %p349 = scmp.lt.s32.totalorder %s23, 1
        %s350 = scalar_select %p349, %s23, 1
        %s351 = smul.addr %s350, 2
        %s352 = smul.addr %s351, 8
        %s353 = scalar_lea.vmem %s2, %s352
        %p354 = scmp.lt.s32.totalorder %s23, 1
        %s355 = scalar_select %p354, %s23, 1
        %s356 = smul.addr %s355, 2
        %s357 = smul.addr %s356, 8
        %s358 = scalar_lea.vmem %s3, %s357
        %p359 = scmp.lt.s32.totalorder %s23, 1
        %s360 = scalar_select %p359, %s23, 1
        %s361 = smul.addr %s360, 2
        %s362 = smul.addr %s361, 8
        %s363 = scalar_lea.vmem %s6, %s362
        %v364 = vlaneseq
        %v365 = vand.u32 %v364, 127
        %v366 = vadd.s32 %v365, 128
        %vm367 = vcmp.lt.s32.totalorder %v365, 0
        %v368 = vsub.s32 0, %v365
        %v369 = vsel %vm367, %v368, %v365
        %v370 = vshrl.u32 %v369, 8
        %v371 = vand.u32 %v369, 255
        %v372 = vsub.s32 0, %v371
        %v373 = vsel %vm367, %v372, %v371
        %vm374 = vcmp.lt.s32.totalorder %v366, 0
        %v375 = vsub.s32 0, %v366
        %v376 = vsel %vm374, %v375, %v366
        %v377 = vshrl.u32 %v376, 8
        %v378 = vand.u32 %v376, 255
        %v379 = vsub.s32 0, %v378
        %v380 = vsel %vm374, %v379, %v378
        %vm381 = vcmp.ne.s32.totalorder %v373, 0
        %vm382 = vcmp.ne.s32.totalorder %v380, 0
        %vm383 = vcmp.lt.s32.totalorder %v373, 0
        %vm384 = vcmp.lt.s32.totalorder %v380, 0
        %vm385 = vmand %vm383, %vm381
        %vm386 = vmand %vm384, %vm382
        %v387 = vadd.s32 %v373, 256
        %v388 = vadd.s32 %v380, 256
        %v389 = vsel %vm385, %v387, %v373
        %v390 = vsel %vm386, %v388, %v380
        %vm391 = vcmp.ge.s32.totalorder %v389, 2
        %vm392 = vcmp.ge.s32.totalorder %v390, 2
        %vm393 = vcmp.ge.s32.totalorder %v389, 1
        %vm394 = vcmp.ge.s32.totalorder %v390, 1
        %vm395 = vcmp.lt.s32.totalorder %v389, 255
        %vm396 = vcmp.lt.s32.totalorder %v390, 255
        %vm397 = vcmp.lt.s32.totalorder %v389, 254
        %vm398 = vcmp.lt.s32.totalorder %v390, 254
        %s399 = sld [smem:[#allocation2]]
        %s400 = sld [smem:[#allocation2 + $0x1]]
        %s401 = sld [smem:[#allocation2 + $0x2]]
        %v402 = vld [vmem:[%s4] sm:$0xff]
        %s403 = scalar_lea.vmem %s4, 8
        %v404 = vld [vmem:[%s403] sm:$0xff]
        %s405 = scalar_lea.vmem %s4, 16
        %v406 = vld [vmem:[%s405] sm:$0xff]
        %v407 = vld [vmem:[%s343] sm:$0xff]
        %v408 = vld [vmem:[%s343 + $0x8] sm:$0xff]
        %v409 = vld [vmem:[%s348] sm:$0xff]
        %v410 = vld [vmem:[%s348 + $0x8] sm:$0xff]
        %v411 = vadd.f32 %v407, %v409
        %v412 = vadd.f32 %v408, %v410
        %v413 = vmul.f32 %v411, 0.70710677
        %v414 = vmul.f32 %v412, 0.70710677
        %vm415 = vcmp.ge.f32.partialorder %v413, 0.0
        %vm416 = vcmp.ge.f32.partialorder %v414, 0.0
        %v417 = vstv %s399
        %v418 = vmul.f32 %v417, %v413
        %v419 = vmul.f32 %v417, %v414
        %v420 = vsel %vm415, %v413, %v418
        %v421 = vsel %vm416, %v414, %v419
        %422 = vrot.lane.b32.xlu0 %v420, 2
        %v423 = vpop.permute.xlu0 %422
        %424 = vrot.lane.b32.xlu0 %v421, 2
        %v425 = vpop.permute.xlu0 %424
        %vm426 = vcmp.lt.s32.totalorder %v365, 2
        %v427 = vsel %vm426, %v423, %v425
        %v428 = vsel %vm426, %v425, %v423
        %v429 = vsel %vm391, %v428, 0.0
        %v430 = vsel %vm392, %v427, 0.0
        %431 = vrot.lane.b32.xlu0 %v420, 1
        %v432 = vpop.permute.xlu0 %431
        %433 = vrot.lane.b32.xlu0 %v421, 1
        %v434 = vpop.permute.xlu0 %433
        %vm435 = vcmp.lt.s32.totalorder %v365, 1
        %v436 = vsel %vm435, %v432, %v434
        %v437 = vsel %vm435, %v434, %v432
        %v438 = vsel %vm393, %v437, 0.0
        %v439 = vsel %vm394, %v436, 0.0
        %440 = vrot.lane.b32.xlu0 %v420, 127
        %v441 = vpop.permute.xlu0 %440
        %442 = vrot.lane.b32.xlu0 %v421, 127
        %v443 = vpop.permute.xlu0 %442
        %vm444 = vcmp.lt.s32.totalorder %v365, 127
        %v445 = vsel %vm444, %v441, %v443
        %v446 = vsel %vm444, %v443, %v441
        %v447 = vsel %vm395, %v445, 0.0
        %v448 = vsel %vm396, %v446, 0.0
        %449 = vrot.lane.b32.xlu0 %v420, 126
        %v450 = vpop.permute.xlu0 %449
        %451 = vrot.lane.b32.xlu0 %v421, 126
        %v452 = vpop.permute.xlu0 %451
        %vm453 = vcmp.lt.s32.totalorder %v365, 126
        %v454 = vsel %vm453, %v450, %v452
        %v455 = vsel %vm453, %v452, %v450
        %v456 = vsel %vm397, %v454, 0.0
        %v457 = vsel %vm398, %v455, 0.0
        %vm458 = vcmask 334848
        %v460 = vsel %vm458, %v402, 0
        %vm462 = vcmask 1040384
        %v464 = vsel %vm462, 1.0, 0
        %466 = vmatprep.subr.mxu0 0.0
        %467 = vmatpush1.msra.mxu0 0.0
        %468 = vmatprep.subr.mxu0 0.0
        %469 = vmatpush1.msra.mxu0 0.0
        %470 = vmatprep.subr.mxu0 0.0
        %471 = vmatpush1.msra.mxu0 0.0
        %472 = vmatprep.subr.mxu0 0.0
        %473 = vmatpush1.msra.mxu0 0.0
        %474 = vmatprep.subr.mxu0 0.0
        %475 = vmatpush1.msra.mxu0 0.0
        %476 = vmatprep.subr.mxu0 0.0
        %477 = vmatpush1.msra.mxu0 0.0
        %478 = vmatprep.subr.mxu0 0.0
        %479 = vmatpush1.msra.mxu0 0.0
        %480 = vmatprep.subr.mxu0 0.0
        %481 = vmatpush1.msra.mxu0 0.0
        %482 = vmatprep.subr.mxu0 0.0
        %483 = vmatpush1.msra.mxu0 0.0
        %484 = vmatprep.subr.mxu0 0.0
        %485 = vmatpush1.msra.mxu0 0.0
        %486 = vmatprep.subr.mxu0 %v464
        %487 = vmatpush1.msra.mxu0 %v464
        %488 = vmatprep.subr.mxu0 %v457
        %489 = vmatpush1.msra.mxu0 %v456
        %490 = vmatprep.subr.mxu0 %v448
        %491 = vmatpush1.msra.mxu0 %v447
        %492 = vmatprep.subr.mxu0 %v421
        %493 = vmatpush1.msra.mxu0 %v420
        %494 = vmatprep.subr.mxu0 %v439
        %495 = vmatpush1.msra.mxu0 %v438
        %496 = vmatprep.subr.mxu0 %v430
        %497 = vmatpush1.msra.mxu0 %v429
        %498 = vmatprep.subr.mxu0 0.0
        %499 = vmatpush2.msra.mxu0 0.0
        %500 = vmatprep.subr.mxu0 0.0
        %501 = vmatpush2.msra.mxu0 0.0
        %502 = vmatprep.subr.mxu0 0.0
        %503 = vmatpush2.msra.mxu0 0.0
        %504 = vmatprep.subr.mxu0 0.0
        %505 = vmatpush2.msra.mxu0 0.0
        %506 = vmatprep.subr.mxu0 0.0
        %507 = vmatpush2.msra.mxu0 0.0
        %508 = vmatprep.subr.mxu0 0.0
        %509 = vmatpush2.msra.mxu0 0.0
        %510 = vmatprep.subr.mxu0 0.0
        %511 = vmatpush2.msra.mxu0 0.0
        %512 = vmatprep.subr.mxu0 0.0
        %513 = vmatpush2.msra.mxu0 0.0
        %514 = vmatprep.subr.mxu0 0.0
        %515 = vmatpush2.msra.mxu0 0.0
        %516 = vmatprep.subr.mxu0 0.0
        %517 = vmatpush2.msra.mxu0 0.0
        %518 = vmatprep.subr.mxu0 0.0
        %519 = vmatpush2.msra.mxu0 0.0
        %520 = vmatprep.subr.mxu0 0.0
        %521 = vmatpush2.msra.mxu0 0.0
        %522 = vmatprep.subr.mxu0 0.0
        %523 = vmatpush2.msra.mxu0 0.0
        %524 = vmatprep.subr.mxu0 0.0
        %525 = vmatpush2.msra.mxu0 0.0
        %526 = vmatprep.subr.mxu0 0.0
        %527 = vmatpush2.msra.mxu0 0.0
        %528 = vmatprep.subr.mxu0 0.0
        %529 = vmatpush2.msra.mxu0 0.0
        %530 = vmatprep.mubr.f32.mxu0 0.0
        %531 = vmatmul.mubr.f32.gmra.mxu0 %v460
        %v532 = vpop.f32.mrf.mxu0
        %v533 = vadd.f32 0.0, %v532
        %v534 = vpop.f32.mrf.mxu0
        %v535 = vadd.f32 0.0, %v534
        %536 = vdwg.mxu0
        %v537 = vld [vmem:[%s353] sm:$0xff]
        %v538 = vld [vmem:[%s353 + $0x8] sm:$0xff]
        %v539 = vadd.f32 %v533, %v537
        %v540 = vadd.f32 %v535, %v538
        %v541 = vmul.f32 %v539, 0.70710677
        %v542 = vmul.f32 %v540, 0.70710677
        %v543 = vld [vmem:[%s358] sm:$0xff]
        %v544 = vld [vmem:[%s358 + $0x8] sm:$0xff]
        %546 = vset.pattern.permute.xlu0 0
        %547 = vperm.xlu0 %546, %v543
        %v548 = vpop.permute.xlu0 %547
        %v550 = vmul.f32 %v548, %v541
        %v551 = vmul.f32 %v548, %v542
        %553 = vset.pattern.permute.xlu0 0
        %554 = vperm.xlu0 %553, %v544
        %v555 = vpop.permute.xlu0 %554
        %v557 = vadd.f32 %v550, %v555
        %v558 = vadd.f32 %v551, %v555
        %vm559 = vcmp.ge.f32.partialorder %v557, 0.0
        %vm560 = vcmp.ge.f32.partialorder %v558, 0.0
        %v561 = vstv %s400
        %v562 = vmul.f32 %v561, %v557
        %v563 = vmul.f32 %v561, %v558
        %v564 = vsel %vm559, %v557, %v562
        %v565 = vsel %vm560, %v558, %v563
        %566 = vrot.lane.b32.xlu0 %v564, 1
        %v567 = vpop.permute.xlu0 %566
        %568 = vrot.lane.b32.xlu0 %v565, 1
        %v569 = vpop.permute.xlu0 %568
        %v570 = vsel %vm435, %v567, %v569
        %v571 = vsel %vm435, %v569, %v567
        %v572 = vsel %vm393, %v571, 0.0
        %v573 = vsel %vm394, %v570, 0.0
        %574 = vrot.lane.b32.xlu0 %v564, 127
        %v575 = vpop.permute.xlu0 %574
        %576 = vrot.lane.b32.xlu0 %v565, 127
        %v577 = vpop.permute.xlu0 %576
        %v578 = vsel %vm444, %v575, %v577
        %v579 = vsel %vm444, %v577, %v575
        %v580 = vsel %vm395, %v578, 0.0
        %v581 = vsel %vm396, %v579, 0.0
        %vm582 = vcmask 203776
        %v584 = vsel %vm582, %v404, 0
        %586 = vmatprep.subr.mxu0 0.0
        %587 = vmatpush1.msra.mxu0 0.0
        %588 = vmatprep.subr.mxu0 0.0
        %589 = vmatpush1.msra.mxu0 0.0
        %590 = vmatprep.subr.mxu0 0.0
        %591 = vmatpush1.msra.mxu0 0.0
        %592 = vmatprep.subr.mxu0 0.0
        %593 = vmatpush1.msra.mxu0 0.0
        %594 = vmatprep.subr.mxu0 0.0
        %595 = vmatpush1.msra.mxu0 0.0
        %596 = vmatprep.subr.mxu0 0.0
        %597 = vmatpush1.msra.mxu0 0.0
        %598 = vmatprep.subr.mxu0 0.0
        %599 = vmatpush1.msra.mxu0 0.0
        %600 = vmatprep.subr.mxu0 0.0
        %601 = vmatpush1.msra.mxu0 0.0
        %602 = vmatprep.subr.mxu0 0.0
        %603 = vmatpush1.msra.mxu0 0.0
        %604 = vmatprep.subr.mxu0 0.0
        %605 = vmatpush1.msra.mxu0 0.0
        %606 = vmatprep.subr.mxu0 0.0
        %607 = vmatpush1.msra.mxu0 0.0
        %608 = vmatprep.subr.mxu0 0.0
        %609 = vmatpush1.msra.mxu0 0.0
        %610 = vmatprep.subr.mxu0 %v464
        %611 = vmatpush1.msra.mxu0 %v464
        %612 = vmatprep.subr.mxu0 %v581
        %613 = vmatpush1.msra.mxu0 %v580
        %614 = vmatprep.subr.mxu0 %v565
        %615 = vmatpush1.msra.mxu0 %v564
        %616 = vmatprep.subr.mxu0 %v573
        %617 = vmatpush1.msra.mxu0 %v572
        %618 = vmatprep.subr.mxu0 0.0
        %619 = vmatpush2.msra.mxu0 0.0
        %620 = vmatprep.subr.mxu0 0.0
        %621 = vmatpush2.msra.mxu0 0.0
        %622 = vmatprep.subr.mxu0 0.0
        %623 = vmatpush2.msra.mxu0 0.0
        %624 = vmatprep.subr.mxu0 0.0
        %625 = vmatpush2.msra.mxu0 0.0
        %626 = vmatprep.subr.mxu0 0.0
        %627 = vmatpush2.msra.mxu0 0.0
        %628 = vmatprep.subr.mxu0 0.0
        %629 = vmatpush2.msra.mxu0 0.0
        %630 = vmatprep.subr.mxu0 0.0
        %631 = vmatpush2.msra.mxu0 0.0
        %632 = vmatprep.subr.mxu0 0.0
        %633 = vmatpush2.msra.mxu0 0.0
        %634 = vmatprep.subr.mxu0 0.0
        %635 = vmatpush2.msra.mxu0 0.0
        %636 = vmatprep.subr.mxu0 0.0
        %637 = vmatpush2.msra.mxu0 0.0
        %638 = vmatprep.subr.mxu0 0.0
        %639 = vmatpush2.msra.mxu0 0.0
        %640 = vmatprep.subr.mxu0 0.0
        %641 = vmatpush2.msra.mxu0 0.0
        %642 = vmatprep.subr.mxu0 0.0
        %643 = vmatpush2.msra.mxu0 0.0
        %644 = vmatprep.subr.mxu0 0.0
        %645 = vmatpush2.msra.mxu0 0.0
        %646 = vmatprep.subr.mxu0 0.0
        %647 = vmatpush2.msra.mxu0 0.0
        %648 = vmatprep.subr.mxu0 0.0
        %649 = vmatpush2.msra.mxu0 0.0
        %650 = vmatprep.mubr.f32.mxu0 0.0
        %651 = vmatmul.mubr.f32.gmra.mxu0 %v584
        %v652 = vpop.f32.mrf.mxu0
        %v653 = vadd.f32 0.0, %v652
        %v654 = vpop.f32.mrf.mxu0
        %v655 = vadd.f32 0.0, %v654
        %656 = vdwg.mxu0
        %vm657 = vcmp.ge.f32.partialorder %v653, 0.0
        %vm658 = vcmp.ge.f32.partialorder %v655, 0.0
        %v659 = vstv %s401
        %v660 = vmul.f32 %v659, %v653
        %v661 = vmul.f32 %v659, %v655
        %v662 = vsel %vm657, %v653, %v660
        %v663 = vsel %vm658, %v655, %v661
        %664 = vrot.lane.b32.xlu0 %v662, 1
        %v665 = vpop.permute.xlu0 %664
        %666 = vrot.lane.b32.xlu0 %v663, 1
        %v667 = vpop.permute.xlu0 %666
        %v668 = vsel %vm435, %v665, %v667
        %v669 = vsel %vm435, %v667, %v665
        %v670 = vsel %vm393, %v669, 0.0
        %v671 = vsel %vm394, %v668, 0.0
        %672 = vrot.lane.b32.xlu0 %v662, 127
        %v673 = vpop.permute.xlu0 %672
        %674 = vrot.lane.b32.xlu0 %v663, 127
        %v675 = vpop.permute.xlu0 %674
        %v676 = vsel %vm444, %v673, %v675
        %v677 = vsel %vm444, %v675, %v673
        %v678 = vsel %vm395, %v676, 0.0
        %v679 = vsel %vm396, %v677, 0.0
        %v681 = vsel %vm582, %v406, 0
        %683 = vmatprep.subr.mxu0 0.0
        %684 = vmatpush1.msra.mxu0 0.0
        %685 = vmatprep.subr.mxu0 0.0
        %686 = vmatpush1.msra.mxu0 0.0
        %687 = vmatprep.subr.mxu0 0.0
        %688 = vmatpush1.msra.mxu0 0.0
        %689 = vmatprep.subr.mxu0 0.0
        %690 = vmatpush1.msra.mxu0 0.0
        %691 = vmatprep.subr.mxu0 0.0
        %692 = vmatpush1.msra.mxu0 0.0
        %693 = vmatprep.subr.mxu0 0.0
        %694 = vmatpush1.msra.mxu0 0.0
        %695 = vmatprep.subr.mxu0 0.0
        %696 = vmatpush1.msra.mxu0 0.0
        %697 = vmatprep.subr.mxu0 0.0
        %698 = vmatpush1.msra.mxu0 0.0
        %699 = vmatprep.subr.mxu0 0.0
        %700 = vmatpush1.msra.mxu0 0.0
        %701 = vmatprep.subr.mxu0 0.0
        %702 = vmatpush1.msra.mxu0 0.0
        %703 = vmatprep.subr.mxu0 0.0
        %704 = vmatpush1.msra.mxu0 0.0
        %705 = vmatprep.subr.mxu0 0.0
        %706 = vmatpush1.msra.mxu0 0.0
        %707 = vmatprep.subr.mxu0 %v464
        %708 = vmatpush1.msra.mxu0 %v464
        %709 = vmatprep.subr.mxu0 %v679
        %710 = vmatpush1.msra.mxu0 %v678
        %711 = vmatprep.subr.mxu0 %v663
        %712 = vmatpush1.msra.mxu0 %v662
        %713 = vmatprep.subr.mxu0 %v671
        %714 = vmatpush1.msra.mxu0 %v670
        %715 = vmatprep.subr.mxu0 0.0
        %716 = vmatpush2.msra.mxu0 0.0
        %717 = vmatprep.subr.mxu0 0.0
        %718 = vmatpush2.msra.mxu0 0.0
        %719 = vmatprep.subr.mxu0 0.0
        %720 = vmatpush2.msra.mxu0 0.0
        %721 = vmatprep.subr.mxu0 0.0
        %722 = vmatpush2.msra.mxu0 0.0
        %723 = vmatprep.subr.mxu0 0.0
        %724 = vmatpush2.msra.mxu0 0.0
        %725 = vmatprep.subr.mxu0 0.0
        %726 = vmatpush2.msra.mxu0 0.0
        %727 = vmatprep.subr.mxu0 0.0
        %728 = vmatpush2.msra.mxu0 0.0
        %729 = vmatprep.subr.mxu0 0.0
        %730 = vmatpush2.msra.mxu0 0.0
        %731 = vmatprep.subr.mxu0 0.0
        %732 = vmatpush2.msra.mxu0 0.0
        %733 = vmatprep.subr.mxu0 0.0
        %734 = vmatpush2.msra.mxu0 0.0
        %735 = vmatprep.subr.mxu0 0.0
        %736 = vmatpush2.msra.mxu0 0.0
        %737 = vmatprep.subr.mxu0 0.0
        %738 = vmatpush2.msra.mxu0 0.0
        %739 = vmatprep.subr.mxu0 0.0
        %740 = vmatpush2.msra.mxu0 0.0
        %741 = vmatprep.subr.mxu0 0.0
        %742 = vmatpush2.msra.mxu0 0.0
        %743 = vmatprep.subr.mxu0 0.0
        %744 = vmatpush2.msra.mxu0 0.0
        %745 = vmatprep.subr.mxu0 0.0
        %746 = vmatpush2.msra.mxu0 0.0
        %747 = vmatprep.mubr.f32.mxu0 0.0
        %748 = vmatmul.mubr.f32.gmra.mxu0 %v681
        %v749 = vpop.f32.mrf.mxu0
        %v750 = vadd.f32 0.0, %v749
        %v751 = vpop.f32.mrf.mxu0
        %v752 = vadd.f32 0.0, %v751
        %753 = vdwg.mxu0
        %v754 = vadd.f32 %v413, %v750
        %v755 = vadd.f32 %v414, %v752
        %v756 = vmul.f32 %v754, 0.70710677
        %v757 = vmul.f32 %v755, 0.70710677
        %758 = vst [vmem:[%s363] sm:$0xff] %v756
        %759 = vst [vmem:[%s363 + $0x8] sm:$0xff] %v757
        %760 = vst [vmem:[%s338] sm:$0xff] %v533
        %761 = vst [vmem:[%s338 + $0x8] sm:$0xff] %v535
        %p762 = scmp.lt.s32.totalorder %s23, 1
        %s763 = scalar_select %p762, %s23, 1
        %s764 = smul.addr %s763, 2
        %s765 = smul.addr %s764, 8
        %s766 = scalar_lea.vmem %s6, %s765
        %s767 = sand.u32 %s203, 1
        %s768 = scalar_lea.sflag [#allocation3], %s767
        %s769 = sand.u32 %s203, 1
        %s770 = smul.addr %s769, 16
        %s771 = scalar_lea.vmem [#allocation5], %s770
        // Predicated region
        $region49: #{conv_block_apply.1} parent=43 // pred_check
          %p772 = pneg %p187
        $region50: #{conv_block_apply.1} parent=43 // pred_check_branch
          %774 = sbr.rel (%p772) target = $region52
        $region51: #{conv_block_apply.1} parent=43 // pred_region
          _
        $region52: #{conv_block_apply.1} parent=43 // pred_fallthru
          _
        // Predicated region
        $region53: #{conv_block_apply.1} parent=43 // pred_check
          %p775 = pneg %p213
        $region54: #{conv_block_apply.1} parent=43 // pred_check_branch
          %777 = sbr.rel (%p775) target = $region56
        $region55: #{conv_block_apply.1} parent=43 // pred_region
          %s779 = ssub.s32 256, 256
          %780 = vsyncadd %s768, %s779
          %s781 = smul.addr %s23, 2
          %s782 = smul.addr %s781, 128
          %s783 = scalar_lea.hbm %s7, %s782
          %s785 = sshll.u32 %s771, 4
          %s786 = int_to_ptr.vmem [resolvable:$true] %s785
          %788 = dma.vmem_to_hbm [thread:$0]  %s786, 256, %s783, %s768
        $region56: #{conv_block_apply.1} parent=43 // pred_fallthru
          _
      $region44: #{conv_block_apply.1} parent=5 // pred_fallthru
        _
      %p789 = scmp.le.s32.totalorder 2, %s18
      // Predicated region
      $region57: #{conv_block_apply.1} parent=5 // pred_check
        %p790 = pneg %p789
      $region58: #{conv_block_apply.1} parent=5 // pred_check_branch
        %792 = sbr.rel (%p790) target = $region60
      $region59: #{conv_block_apply.1} parent=5 // pred_region
        %s793 = ssub.s32 %s18, 2
        // Predicated region
        $region61: #{conv_block_apply.1} parent=59 // pred_check
          %p794 = pneg %p193
        $region62: #{conv_block_apply.1} parent=59 // pred_check_branch
          %796 = sbr.rel (%p794) target = $region64
        $region63: #{conv_block_apply.1} parent=59 // pred_region
          %p797 = scmp.lt.s32.totalorder %s24, 1
          %s798 = scalar_select %p797, %s24, 1
          %s799 = smul.addr %s798, 2
          %s800 = smul.addr %s799, 8
          %s801 = scalar_lea.vmem %s6, %s800
        $region64: #{conv_block_apply.1} parent=59 // pred_fallthru
          _
        // Predicated region
        $region65: #{conv_block_apply.1} parent=59 // pred_check
          %p802 = pneg %p219
        $region66: #{conv_block_apply.1} parent=59 // pred_check_branch
          %804 = sbr.rel (%p802) target = $region68
        $region67: #{conv_block_apply.1} parent=59 // pred_region
          %s805 = sand.u32 %s204, 1
          %s806 = scalar_lea.sflag [#allocation3], %s805
          %s807 = sand.u32 %s204, 1
          %s808 = smul.addr %s807, 16
          %s809 = scalar_lea.vmem [#allocation5], %s808
          %810 = dma.done %s806, 256
        $region68: #{conv_block_apply.1} parent=59 // pred_fallthru
          _
      $region60: #{conv_block_apply.1} parent=5 // pred_fallthru
        _
    $region6: #{conv_block_apply.1} parent=1 // loop_footer
      %s22 = sadd.s32 1, %s18
    $region7: #{conv_block_apply.1} parent=1 // loop_footer_branch
      %17 = sbr.rel target = $region3
    $region8: #{conv_block_apply.1} parent=1 // loop_exit
      _
    %811 = vsyncpa [#allocation3], 1
    %s812 = scalar_lea.sflag [#allocation3], 1
    %813 = vsyncpa %s812, 1
    %814 = vsyncpa [#allocation4], 1
    %s815 = scalar_lea.sflag [#allocation4], 1
    %816 = vsyncpa %s815, 1

</llo_original>
